<compile_context>
chip_gen: v7x
topology: tpu7x:2x2x1
jax: 0.10.0
libtpu: 0.0.40
codegen_flags: <defaults>
</compile_context>

<pallas_src>
import functools

import numpy as np
import jax
import jax.numpy as jnp
from jax.experimental import pallas as pl
from jax.experimental.pallas import tpu as pltpu


def _ffl_kernel(pred_ref, targ_ref, ah_ref, bh_ref, awb_ref, bwb_ref,
                max_ref, num_ref, *, alpha, log_matrix):
    # One lane-dense slab of B images: (ph, B*pw), images side-by-side on lanes.
    d = pred_ref[0] - targ_ref[0]            # FFT(p) - FFT(t) == FFT(p - t)

    # Width DFT via block-diagonal matrices: a single matmul transforms all B
    # images; contraction dim = B*pw (MXU-filling), output stays lane-dense.
    yr = jnp.dot(d, awb_ref[...], preferred_element_type=jnp.float32)
    yi = jnp.dot(d, bwb_ref[...], preferred_element_type=jnp.float32)

    # Height DFT, shared across the B images (left-multiplication).
    ah = ah_ref[...]
    bh = bh_ref[...]
    fr = (jnp.dot(ah, yr, preferred_element_type=jnp.float32)
          - jnp.dot(bh, yi, preferred_element_type=jnp.float32))
    fi = (jnp.dot(ah, yi, preferred_element_type=jnp.float32)
          + jnp.dot(bh, yr, preferred_element_type=jnp.float32))

    dist = fr * fr + fi * fi                 # freq_distance, (ph, B*pw)

    # Unnormalised weight * distance.  The per-image max normalisation becomes
    # a scalar division applied after the per-image reduction (epilogue).
    if alpha == 1.0 and not log_matrix:      # default path: no pow (exp/log) needed
        g = jnp.sqrt(dist) * dist            # == dist ** 1.5
    else:
        w = dist ** jnp.float32(0.5 * alpha)
        if log_matrix:
            w = jnp.log(w + 1.0)
        g = w * dist

    # Lane-dense per-column partial reductions (sublane reduce only).
    max_ref[...] = jnp.max(dist, axis=0, keepdims=True).reshape(max_ref.shape)
    num_ref[...] = jnp.sum(g, axis=0, keepdims=True).reshape(num_ref.shape)


@functools.lru_cache(maxsize=None)
def _dft_consts(ph, pw, b):
    """Ortho-normalised DFT matrices; width DFT replicated block-diagonally b times."""
    def mats(n):
        k = np.arange(n)
        ang = 2.0 * np.pi * np.outer(k, k) / n
        s = 1.0 / np.sqrt(n)
        return (np.cos(ang) * s).astype(np.float32), (-np.sin(ang) * s).astype(np.float32)

    ah, bh = mats(ph)
    aw, bw = mats(pw)
    eye = np.eye(b, dtype=np.float32)
    # The DFT matrix is symmetric, so D_W^T == D_W; block-diag applies it per image.
    awb = np.kron(eye, aw)
    bwb = np.kron(eye, bw)
    return jnp.asarray(ah), jnp.asarray(bh), jnp.asarray(awb), jnp.asarray(bwb)


def _group_size(pw):
    # Pack enough images along the lane axis to reach ~128 lanes.
    return 1 if pw >= 128 else max(1, 128 // pw)


@functools.partial(
    jax.jit, static_argnames=("loss_weight", "alpha", "patch_factor", "log_matrix"))
def focal_frequency_loss(pred, target, *, loss_weight=1.0, alpha=1.0,
                         patch_factor=1, log_matrix=False):
    # TODO(synk): ave_spectrum=True, batch_matrix=True and an externally supplied
    # `matrix` (all off/None by default in the module) are not implemented.
    n, c, h, w = pred.shape
    assert h % patch_factor == 0 and w % patch_factor == 0
    ph, pw = h // patch_factor, w // patch_factor
    bc = n * patch_factor * patch_factor * c     # number of (ph, pw) images
    B = _group_size(pw)                          # images per grid step
    G = -(-bc // B)                              # grid size (ceil)
    pad = G * B - bc
    BW = B * pw

    def to_groups(x):
        # tensor2freq patch extraction (patch index = i*pf + j) ...
        x = x.astype(jnp.float32).reshape(n, c, patch_factor, ph, patch_factor, pw)
        x = jnp.transpose(x, (0, 2, 4, 1, 3, 5)).reshape(bc, ph, pw)
        # ... then pack B images side-by-side along the lane axis: (G, ph, B*pw).
        # Padded (all-zero) images yield dist == 0 -> zero contribution.
        if pad:
            x = jnp.concatenate([x, jnp.zeros((pad, ph, pw), jnp.float32)], axis=0)
        x = jnp.transpose(x.reshape(G, B, ph, pw), (0, 2, 1, 3)).reshape(G, ph, BW)
        return x
        # TODO(synk): for patch_factor > 1 the patch extraction could be folded
        # into the BlockSpec index_map to avoid the extra XLA transpose pass.

    pg = to_groups(pred)
    tg = to_groups(target)
    ah, bh, awb, bwb = _dft_consts(ph, pw, B)

    kernel = functools.partial(_ffl_kernel, alpha=float(alpha),
                               log_matrix=bool(log_matrix))

    colmax, colnum = pl.pallas_call(
        kernel,
        out_shape=(jax.ShapeDtypeStruct((G, 1, BW), jnp.float32),
                   jax.ShapeDtypeStruct((G, 1, BW), jnp.float32)),
        grid_spec=pltpu.PrefetchScalarGridSpec(
            num_scalar_prefetch=0,
            grid=(G,),
            in_specs=[
                pl.BlockSpec((1, ph, BW), lambda i: (i, 0, 0)),  # pred groups
                pl.BlockSpec((1, ph, BW), lambda i: (i, 0, 0)),  # target groups
                pl.BlockSpec((ph, ph), lambda i: (0, 0)),        # row-DFT cos
                pl.BlockSpec((ph, ph), lambda i: (0, 0)),        # row-DFT -sin
                pl.BlockSpec((BW, BW), lambda i: (0, 0)),        # col-DFT cos (block-diag)
                pl.BlockSpec((BW, BW), lambda i: (0, 0)),        # col-DFT -sin (block-diag)
            ],
            out_specs=[
                pl.BlockSpec((1, 1, BW), lambda i: (i, 0, 0)),   # per-column max(dist)
                pl.BlockSpec((1, 1, BW), lambda i: (i, 0, 0)),   # per-column sum(w*dist)
            ],
        ),
        compiler_params=pltpu.CompilerParams(
            dimension_semantics=("parallel",)),   # disjoint outputs, no carried state
    )(pg, tg, ah, bh, awb, bwb)

    # Tiny epilogue (O(images * pw) elements): finish the per-image segmented
    # reductions and apply the per-image normalisation as a scalar divide:
    #   loss_i = sum(w_unnorm * dist) / max(w_unnorm),  w_unnorm = sqrt(dist)^alpha
    # (log variant when log_matrix).  max == 0 gives NaN weights in the
    # reference, which it zeroes -> contribution 0; padded images hit the same
    # branch.
    per_max = jnp.max(colmax.reshape(G * B, pw), axis=1)
    per_num = jnp.sum(colnum.reshape(G * B, pw), axis=1)
    if float(alpha) == 1.0 and not log_matrix:
        denom = jnp.sqrt(per_max)
    else:
        denom = per_max ** jnp.float32(0.5 * alpha)
        if log_matrix:
            denom = jnp.log(denom + 1.0)
    safe = jnp.where(denom > 0, denom, 1.0)
    loss = jnp.sum(jnp.where(denom > 0, per_num / safe, 0.0))
    return loss * jnp.float32(loss_weight)


def _reference_loss(pred, target, alpha=1.0):
    # Pure-JAX mirror of the PyTorch module (defaults: patch_factor=1,
    # matrix=None, log_matrix=False, batch_matrix=False, ave_spectrum=False).
    fp = jnp.fft.fft2(pred.astype(jnp.float32), norm="ortho")
    ft = jnp.fft.fft2(target.astype(jnp.float32), norm="ortho")
    d = fp - ft
    dist = d.real ** 2 + d.imag ** 2
    w = jnp.sqrt(dist) ** alpha
    w = w / jnp.max(w, axis=(-2, -1), keepdims=True)
    w = jnp.nan_to_num(w, nan=0.0)
    w = jnp.clip(w, 0.0, 1.0)
    return jnp.sum(w * dist)


if __name__ == "__main__":
    key = jax.random.PRNGKey(0)
    k1, k2 = jax.random.split(key)
    pred = jax.random.normal(k1, (2, 4, 16, 16), dtype=jnp.float32)
    target = jax.random.normal(k2, (2, 4, 16, 16), dtype=jnp.float32)

    loss = focal_frequency_loss(pred, target)
    loss = jax.block_until_ready(loss)

    ref = _reference_loss(pred, target)
    assert jnp.allclose(loss, ref, rtol=1e-2, atol=1e-3), (loss, ref)

    print("KERNEL_OK")
</pallas_src>

<mosaic_0001>
module attributes {stable_mosaic.version = 11 : i64} {
  func.func @_ffl_kernel(%arg0: i32, %arg1: memref<1x16x128xf32, #tpu.memory_space<vmem>>, %arg2: memref<1x16x128xf32, #tpu.memory_space<vmem>>, %arg3: memref<16x16xf32, #tpu.memory_space<vmem>>, %arg4: memref<16x16xf32, #tpu.memory_space<vmem>>, %arg5: memref<128x128xf32, #tpu.memory_space<vmem>>, %arg6: memref<128x128xf32, #tpu.memory_space<vmem>>, %arg7: memref<1x1x128xf32, #tpu.memory_space<vmem>>, %arg8: memref<1x1x128xf32, #tpu.memory_space<vmem>>) attributes {dimension_semantics = [#tpu.dimension_semantics<parallel>], iteration_bounds = array<i64: 1>, scalar_prefetch = 0 : i64, scratch_operands = 0 : i64, tpu.core_type = #tpu.core_type<tc>, window_params = [{transform_indices = @transform_0, window_bounds = array<i64: 1, 16, 128>}, {transform_indices = @transform_1, window_bounds = array<i64: 1, 16, 128>}, {pipeline_mode = #tpu.pipeline_mode<synchronous>, transform_indices = @transform_2, window_bounds = array<i64: 16, 16>}, {pipeline_mode = #tpu.pipeline_mode<synchronous>, transform_indices = @transform_3, window_bounds = array<i64: 16, 16>}, {pipeline_mode = #tpu.pipeline_mode<synchronous>, transform_indices = @transform_4, window_bounds = array<i64: 128, 128>}, {pipeline_mode = #tpu.pipeline_mode<synchronous>, transform_indices = @transform_5, window_bounds = array<i64: 128, 128>}, {transform_indices = @transform_6, window_bounds = array<i64: 1, 1, 128>}, {transform_indices = @transform_7, window_bounds = array<i64: 1, 1, 128>}]} {
    %c0 = arith.constant 0 : index
    %c0_0 = arith.constant 0 : index
    %c0_1 = arith.constant 0 : index
    %0 = vector.load %arg1[%c0, %c0_0, %c0_1] : memref<1x16x128xf32, #tpu.memory_space<vmem>>, vector<1x16x128xf32>
    %1 = vector.shape_cast %0 : vector<1x16x128xf32> to vector<16x128xf32>
    %c0_2 = arith.constant 0 : index
    %c0_3 = arith.constant 0 : index
    %c0_4 = arith.constant 0 : index
    %2 = vector.load %arg2[%c0_2, %c0_3, %c0_4] : memref<1x16x128xf32, #tpu.memory_space<vmem>>, vector<1x16x128xf32>
    %3 = vector.shape_cast %2 : vector<1x16x128xf32> to vector<16x128xf32>
    %4 = arith.subf %1, %3 : vector<16x128xf32>
    %c0_5 = arith.constant 0 : index
    %c0_6 = arith.constant 0 : index
    %5 = vector.load %arg5[%c0_5, %c0_6] : memref<128x128xf32, #tpu.memory_space<vmem>>, vector<128x128xf32>
    %cst = arith.constant dense<0.000000e+00> : vector<16x128xf32>
    %6 = tpu.matmul %4, %5, %cst {dimension_numbers = #tpu.dot_dimension_numbers<[1], [0], [0], [1], [0, 0, 1, 1], [], []>} : vector<16x128xf32>, vector<128x128xf32>, vector<16x128xf32> -> vector<16x128xf32>
    %c0_7 = arith.constant 0 : index
    %c0_8 = arith.constant 0 : index
    %7 = vector.load %arg6[%c0_7, %c0_8] : memref<128x128xf32, #tpu.memory_space<vmem>>, vector<128x128xf32>
    %cst_9 = arith.constant dense<0.000000e+00> : vector<16x128xf32>
    %8 = tpu.matmul %4, %7, %cst_9 {dimension_numbers = #tpu.dot_dimension_numbers<[1], [0], [0], [1], [0, 0, 1, 1], [], []>} : vector<16x128xf32>, vector<128x128xf32>, vector<16x128xf32> -> vector<16x128xf32>
    %c0_10 = arith.constant 0 : index
    %c0_11 = arith.constant 0 : index
    %9 = vector.load %arg3[%c0_10, %c0_11] : memref<16x16xf32, #tpu.memory_space<vmem>>, vector<16x16xf32>
    %c0_12 = arith.constant 0 : index
    %c0_13 = arith.constant 0 : index
    %10 = vector.load %arg4[%c0_12, %c0_13] : memref<16x16xf32, #tpu.memory_space<vmem>>, vector<16x16xf32>
    %cst_14 = arith.constant dense<0.000000e+00> : vector<16x128xf32>
    %11 = tpu.matmul %9, %6, %cst_14 {dimension_numbers = #tpu.dot_dimension_numbers<[1], [0], [0], [1], [0, 0, 1, 1], [], []>} : vector<16x16xf32>, vector<16x128xf32>, vector<16x128xf32> -> vector<16x128xf32>
    %cst_15 = arith.constant dense<0.000000e+00> : vector<16x128xf32>
    %12 = tpu.matmul %10, %8, %cst_15 {dimension_numbers = #tpu.dot_dimension_numbers<[1], [0], [0], [1], [0, 0, 1, 1], [], []>} : vector<16x16xf32>, vector<16x128xf32>, vector<16x128xf32> -> vector<16x128xf32>
    %13 = arith.subf %11, %12 : vector<16x128xf32>
    %cst_16 = arith.constant dense<0.000000e+00> : vector<16x128xf32>
    %14 = tpu.matmul %9, %8, %cst_16 {dimension_numbers = #tpu.dot_dimension_numbers<[1], [0], [0], [1], [0, 0, 1, 1], [], []>} : vector<16x16xf32>, vector<16x128xf32>, vector<16x128xf32> -> vector<16x128xf32>
    %cst_17 = arith.constant dense<0.000000e+00> : vector<16x128xf32>
    %15 = tpu.matmul %10, %6, %cst_17 {dimension_numbers = #tpu.dot_dimension_numbers<[1], [0], [0], [1], [0, 0, 1, 1], [], []>} : vector<16x16xf32>, vector<16x128xf32>, vector<16x128xf32> -> vector<16x128xf32>
    %16 = arith.addf %14, %15 : vector<16x128xf32>
    %17 = arith.mulf %13, %13 : vector<16x128xf32>
    %18 = arith.mulf %16, %16 : vector<16x128xf32>
    %19 = arith.addf %17, %18 : vector<16x128xf32>
    %20 = math.sqrt %19 : vector<16x128xf32>
    %21 = arith.mulf %20, %19 : vector<16x128xf32>
    %cst_18 = arith.constant dense<0xFF800000> : vector<128xf32>
    %22 = vector.multi_reduction <maximumf>, %19, %cst_18 [0] : vector<16x128xf32> to vector<128xf32>
    %23 = vector.shape_cast %22 : vector<128xf32> to vector<1x128xf32>
    %24 = vector.shape_cast %23 : vector<1x128xf32> to vector<1x1x128xf32>
    %c0_19 = arith.constant 0 : index
    %c0_20 = arith.constant 0 : index
    %c0_21 = arith.constant 0 : index
    %25 = vector.load %arg7[%c0_19, %c0_20, %c0_21] : memref<1x1x128xf32, #tpu.memory_space<vmem>>, vector<1x1x128xf32>
    tpu.vector_store %arg7[%c0_19, %c0_20, %c0_21], %24 {strides = array<i32>} : memref<1x1x128xf32, #tpu.memory_space<vmem>>, vector<1x1x128xf32>,
    %cst_22 = arith.constant dense<0.000000e+00> : vector<128xf32>
    %26 = vector.multi_reduction <add>, %21, %cst_22 [0] : vector<16x128xf32> to vector<128xf32>
    %27 = vector.shape_cast %26 : vector<128xf32> to vector<1x128xf32>
    %28 = vector.shape_cast %27 : vector<1x128xf32> to vector<1x1x128xf32>
    %c0_23 = arith.constant 0 : index
    %c0_24 = arith.constant 0 : index
    %c0_25 = arith.constant 0 : index
    %29 = vector.load %arg8[%c0_23, %c0_24, %c0_25] : memref<1x1x128xf32, #tpu.memory_space<vmem>>, vector<1x1x128xf32>
    tpu.vector_store %arg8[%c0_23, %c0_24, %c0_25], %28 {strides = array<i32>} : memref<1x1x128xf32, #tpu.memory_space<vmem>>, vector<1x1x128xf32>,
    return
  }
  func.func @transform_0(%arg0: i32) -> (i32, i32, i32) {
    %c0_i32 = arith.constant 0 : i32
    %c0_i32_0 = arith.constant 0 : i32
    %c0_i32_1 = arith.constant 0 : i32
    return %arg0, %c0_i32, %c0_i32_0 : i32, i32, i32
  }
  func.func @transform_1(%arg0: i32) -> (i32, i32, i32) {
    %c0_i32 = arith.constant 0 : i32
    %c0_i32_0 = arith.constant 0 : i32
    %c0_i32_1 = arith.constant 0 : i32
    return %arg0, %c0_i32, %c0_i32_0 : i32, i32, i32
  }
  func.func @transform_2(%arg0: i32) -> (i32, i32) {
    %c0_i32 = arith.constant 0 : i32
    %c0_i32_0 = arith.constant 0 : i32
    %c0_i32_1 = arith.constant 0 : i32
    return %c0_i32, %c0_i32_0 : i32, i32
  }
  func.func @transform_3(%arg0: i32) -> (i32, i32) {
    %c0_i32 = arith.constant 0 : i32
    %c0_i32_0 = arith.constant 0 : i32
    %c0_i32_1 = arith.constant 0 : i32
    return %c0_i32, %c0_i32_0 : i32, i32
  }
  func.func @transform_4(%arg0: i32) -> (i32, i32) {
    %c0_i32 = arith.constant 0 : i32
    %c0_i32_0 = arith.constant 0 : i32
    %c0_i32_1 = arith.constant 0 : i32
    return %c0_i32, %c0_i32_0 : i32, i32
  }
  func.func @transform_5(%arg0: i32) -> (i32, i32) {
    %c0_i32 = arith.constant 0 : i32
    %c0_i32_0 = arith.constant 0 : i32
    %c0_i32_1 = arith.constant 0 : i32
    return %c0_i32, %c0_i32_0 : i32, i32
  }
  func.func @transform_6(%arg0: i32) -> (i32, i32, i32) {
    %c0_i32 = arith.constant 0 : i32
    %c0_i32_0 = arith.constant 0 : i32
    %c0_i32_1 = arith.constant 0 : i32
    return %arg0, %c0_i32, %c0_i32_0 : i32, i32, i32
  }
  func.func @transform_7(%arg0: i32) -> (i32, i32, i32) {
    %c0_i32 = arith.constant 0 : i32
    %c0_i32_0 = arith.constant 0 : i32
    %c0_i32_1 = arith.constant 0 : i32
    return %arg0, %c0_i32, %c0_i32_0 : i32, i32, i32
  }
}

</mosaic_0001>

<llo_original>
// kernel: focal_frequency_loss.1
$region0: #{focal_frequency_loss.1}
  #allocation0 [shape = 'u32[]', space=smem, size = 0x4, offset = 0x4, fixed_abs, tag = 'smem constant byte address 0x4 - core index']
  #allocation1 [shape = 'u32[144,128]{1,0:T(1,128)}', space=vmem, size = 0x12000, scoped, tag = 'internal scratch']
  %s0 = inlined_call_operand.vmem [shape: f32[1,16,128], index: 0, kind: input, shape index: {}]
  %s1 = inlined_call_operand.vmem [shape: f32[1,16,128], index: 1, kind: input, shape index: {}]
  %s2 = inlined_call_operand.vmem [shape: f32[16,16], index: 2, kind: input, shape index: {}]
  %s3 = inlined_call_operand.vmem [shape: f32[16,16], index: 3, kind: input, shape index: {}]
  %s4 = inlined_call_operand.vmem [shape: f32[128,128], index: 4, kind: input, shape index: {}]
  %s5 = inlined_call_operand.vmem [shape: f32[128,128], index: 5, kind: input, shape index: {}]
  %s6 = inlined_call_operand.vmem [shape: f32[1,1,128], index: 6, kind: output, shape index: {0}]
  %s7 = inlined_call_operand.vmem [shape: f32[1,1,128], index: 7, kind: output, shape index: {1}]
  %8 = xla_tuple %s6, %s7
  %s9 = sld [smem:[#allocation0]]
  $region42: #{focal_frequency_loss.1} parent=0
    _
  %s11 = ssub.s32 1, %s9
  %s12 = scalar_select 0, %s11, %s9
  // Predicated region
  $region2: #{focal_frequency_loss.1} parent=0 // pred_check
    _
  $region3: #{focal_frequency_loss.1} parent=0 // pred_check_branch
    %14 = sbr.rel (0) target = $region5
  $region4: #{focal_frequency_loss.1} parent=0 // pred_region
    _
  $region5: #{focal_frequency_loss.1} parent=0 // pred_fallthru
    _
  // Predicated region
  $region6: #{focal_frequency_loss.1} parent=0 // pred_check
    _
  $region7: #{focal_frequency_loss.1} parent=0 // pred_check_branch
    %16 = sbr.rel (0) target = $region9
  $region8: #{focal_frequency_loss.1} parent=0 // pred_region
    _
  $region9: #{focal_frequency_loss.1} parent=0 // pred_fallthru
    _
  // Predicated region
  $region10: #{focal_frequency_loss.1} parent=0 // pred_check
    _
  $region11: #{focal_frequency_loss.1} parent=0 // pred_check_branch
    %18 = sbr.rel (0) target = $region13
  $region12: #{focal_frequency_loss.1} parent=0 // pred_region
    _
  $region13: #{focal_frequency_loss.1} parent=0 // pred_fallthru
    _
  // Predicated region
  $region14: #{focal_frequency_loss.1} parent=0 // pred_check
    _
  $region15: #{focal_frequency_loss.1} parent=0 // pred_check_branch
    %20 = sbr.rel (0) target = $region17
  $region16: #{focal_frequency_loss.1} parent=0 // pred_region
    _
  $region17: #{focal_frequency_loss.1} parent=0 // pred_fallthru
    _
  // Predicated region
  $region18: #{focal_frequency_loss.1} parent=0 // pred_check
    _
  $region19: #{focal_frequency_loss.1} parent=0 // pred_check_branch
    %22 = sbr.rel (0) target = $region21
  $region20: #{focal_frequency_loss.1} parent=0 // pred_region
    _
  $region21: #{focal_frequency_loss.1} parent=0 // pred_fallthru
    _
  // Predicated region
  $region22: #{focal_frequency_loss.1} parent=0 // pred_check
    _
  $region23: #{focal_frequency_loss.1} parent=0 // pred_check_branch
    %24 = sbr.rel (0) target = $region25
  $region24: #{focal_frequency_loss.1} parent=0 // pred_region
    _
  $region25: #{focal_frequency_loss.1} parent=0 // pred_fallthru
    _
  %v25 = vld [vmem:[%s0] sm:$0xff]
  %v26 = vld [vmem:[%s0 + $0x8] sm:$0xff]
  %v27 = vld [vmem:[%s1] sm:$0xff]
  %v28 = vld [vmem:[%s1 + $0x8] sm:$0xff]
  %v29 = vsub.f32 %v25, %v27
  %v30 = vsub.f32 %v26, %v28
  %v31 = vld [vmem:[%s4] sm:$0xff]
  %v32 = vld [vmem:[%s4 + $0x8] sm:$0xff]
  %v33 = vld [vmem:[%s4 + $0x10] sm:$0xff]
  %v34 = vld [vmem:[%s4 + $0x18] sm:$0xff]
  %v35 = vld [vmem:[%s4 + $0x20] sm:$0xff]
  %v36 = vld [vmem:[%s4 + $0x28] sm:$0xff]
  %v37 = vld [vmem:[%s4 + $0x30] sm:$0xff]
  %v38 = vld [vmem:[%s4 + $0x38] sm:$0xff]
  %v39 = vld [vmem:[%s4 + $0x40] sm:$0xff]
  %v40 = vld [vmem:[%s4 + $0x48] sm:$0xff]
  %v41 = vld [vmem:[%s4 + $0x50] sm:$0xff]
  %v42 = vld [vmem:[%s4 + $0x58] sm:$0xff]
  %v43 = vld [vmem:[%s4 + $0x60] sm:$0xff]
  %v44 = vld [vmem:[%s4 + $0x68] sm:$0xff]
  %v45 = vld [vmem:[%s4 + $0x70] sm:$0xff]
  %v46 = vld [vmem:[%s4 + $0x78] sm:$0xff]
  %47 = vmatprep.subr.mxu0 0.0
  %48 = vmatpush1.msra.mxu0 %v31
  %49 = vmatprep.subr.mxu0 0.0
  %50 = vmatpush1.msra.mxu0 %v32
  %51 = vmatprep.subr.mxu0 0.0
  %52 = vmatpush1.msra.mxu0 %v33
  %53 = vmatprep.subr.mxu0 0.0
  %54 = vmatpush1.msra.mxu0 %v34
  %55 = vmatprep.subr.mxu0 0.0
  %56 = vmatpush1.msra.mxu0 %v35
  %57 = vmatprep.subr.mxu0 0.0
  %58 = vmatpush1.msra.mxu0 %v36
  %59 = vmatprep.subr.mxu0 0.0
  %60 = vmatpush1.msra.mxu0 %v37
  %61 = vmatprep.subr.mxu0 0.0
  %62 = vmatpush1.msra.mxu0 %v38
  %63 = vmatprep.subr.mxu0 0.0
  %64 = vmatpush1.msra.mxu0 %v39
  %65 = vmatprep.subr.mxu0 0.0
  %66 = vmatpush1.msra.mxu0 %v40
  %67 = vmatprep.subr.mxu0 0.0
  %68 = vmatpush1.msra.mxu0 %v41
  %69 = vmatprep.subr.mxu0 0.0
  %70 = vmatpush1.msra.mxu0 %v42
  %71 = vmatprep.subr.mxu0 0.0
  %72 = vmatpush1.msra.mxu0 %v43
  %73 = vmatprep.subr.mxu0 0.0
  %74 = vmatpush1.msra.mxu0 %v44
  %75 = vmatprep.subr.mxu0 0.0
  %76 = vmatpush1.msra.mxu0 %v45
  %77 = vmatprep.subr.mxu0 0.0
  %78 = vmatpush1.msra.mxu0 %v46
  %79 = vmatprep.subr.mxu0 0.0
  %80 = vmatpush1.msra.mxu0 0.0
  %81 = vmatprep.subr.mxu0 0.0
  %82 = vmatpush1.msra.mxu0 0.0
  %83 = vmatprep.subr.mxu0 0.0
  %84 = vmatpush1.msra.mxu0 0.0
  %85 = vmatprep.subr.mxu0 0.0
  %86 = vmatpush1.msra.mxu0 0.0
  %87 = vmatprep.subr.mxu0 0.0
  %88 = vmatpush1.msra.mxu0 0.0
  %89 = vmatprep.subr.mxu0 0.0
  %90 = vmatpush1.msra.mxu0 0.0
  %91 = vmatprep.subr.mxu0 0.0
  %92 = vmatpush1.msra.mxu0 0.0
  %93 = vmatprep.subr.mxu0 0.0
  %94 = vmatpush1.msra.mxu0 0.0
  %95 = vmatprep.subr.mxu0 0.0
  %96 = vmatpush1.msra.mxu0 0.0
  %97 = vmatprep.subr.mxu0 0.0
  %98 = vmatpush1.msra.mxu0 0.0
  %99 = vmatprep.subr.mxu0 0.0
  %100 = vmatpush1.msra.mxu0 0.0
  %101 = vmatprep.subr.mxu0 0.0
  %102 = vmatpush1.msra.mxu0 0.0
  %103 = vmatprep.subr.mxu0 0.0
  %104 = vmatpush1.msra.mxu0 0.0
  %105 = vmatprep.subr.mxu0 0.0
  %106 = vmatpush1.msra.mxu0 0.0
  %107 = vmatprep.subr.mxu0 0.0
  %108 = vmatpush1.msra.mxu0 0.0
  %109 = vmatprep.subr.mxu0 0.0
  %110 = vmatpush1.msra.mxu0 0.0
  %111 = vmatprep.mubr.f32.mxu0 0.0
  %112 = vmatmul.mubr.f32.gmra.mrb[0].mxu0 %v29
  %v113 = vpop.f32.mrb[0].mxu0
  %v114 = vadd.f32 0.0, %v113
  %v115 = vpop.f32.mrb[0].mxu0
  %116 = vmatprep.mubr.f32.mxu0 0.0
  %117 = vmatmul.mubr.f32.gmra.mrb[0].mxu0 %v30
  %v118 = vpop.f32.mrb[0].mxu0
  %v119 = vadd.f32 0.0, %v118
  %v120 = vpop.f32.mrb[0].mxu0
  %121 = vdwg.mxu0
  %v122 = vld [vmem:[%s5] sm:$0xff]
  %v123 = vld [vmem:[%s5 + $0x8] sm:$0xff]
  %v124 = vld [vmem:[%s5 + $0x10] sm:$0xff]
  %v125 = vld [vmem:[%s5 + $0x18] sm:$0xff]
  %v126 = vld [vmem:[%s5 + $0x20] sm:$0xff]
  %v127 = vld [vmem:[%s5 + $0x28] sm:$0xff]
  %v128 = vld [vmem:[%s5 + $0x30] sm:$0xff]
  %v129 = vld [vmem:[%s5 + $0x38] sm:$0xff]
  %v130 = vld [vmem:[%s5 + $0x40] sm:$0xff]
  %v131 = vld [vmem:[%s5 + $0x48] sm:$0xff]
  %v132 = vld [vmem:[%s5 + $0x50] sm:$0xff]
  %v133 = vld [vmem:[%s5 + $0x58] sm:$0xff]
  %v134 = vld [vmem:[%s5 + $0x60] sm:$0xff]
  %v135 = vld [vmem:[%s5 + $0x68] sm:$0xff]
  %v136 = vld [vmem:[%s5 + $0x70] sm:$0xff]
  %v137 = vld [vmem:[%s5 + $0x78] sm:$0xff]
  %138 = vmatprep.subr.mxu0 0.0
  %139 = vmatpush1.msra.mxu0 %v122
  %140 = vmatprep.subr.mxu0 0.0
  %141 = vmatpush1.msra.mxu0 %v123
  %142 = vmatprep.subr.mxu0 0.0
  %143 = vmatpush1.msra.mxu0 %v124
  %144 = vmatprep.subr.mxu0 0.0
  %145 = vmatpush1.msra.mxu0 %v125
  %146 = vmatprep.subr.mxu0 0.0
  %147 = vmatpush1.msra.mxu0 %v126
  %148 = vmatprep.subr.mxu0 0.0
  %149 = vmatpush1.msra.mxu0 %v127
  %150 = vmatprep.subr.mxu0 0.0
  %151 = vmatpush1.msra.mxu0 %v128
  %152 = vmatprep.subr.mxu0 0.0
  %153 = vmatpush1.msra.mxu0 %v129
  %154 = vmatprep.subr.mxu0 0.0
  %155 = vmatpush1.msra.mxu0 %v130
  %156 = vmatprep.subr.mxu0 0.0
  %157 = vmatpush1.msra.mxu0 %v131
  %158 = vmatprep.subr.mxu0 0.0
  %159 = vmatpush1.msra.mxu0 %v132
  %160 = vmatprep.subr.mxu0 0.0
  %161 = vmatpush1.msra.mxu0 %v133
  %162 = vmatprep.subr.mxu0 0.0
  %163 = vmatpush1.msra.mxu0 %v134
  %164 = vmatprep.subr.mxu0 0.0
  %165 = vmatpush1.msra.mxu0 %v135
  %166 = vmatprep.subr.mxu0 0.0
  %167 = vmatpush1.msra.mxu0 %v136
  %168 = vmatprep.subr.mxu0 0.0
  %169 = vmatpush1.msra.mxu0 %v137
  %170 = vmatprep.subr.mxu0 0.0
  %171 = vmatpush1.msra.mxu0 0.0
  %172 = vmatprep.subr.mxu0 0.0
  %173 = vmatpush1.msra.mxu0 0.0
  %174 = vmatprep.subr.mxu0 0.0
  %175 = vmatpush1.msra.mxu0 0.0
  %176 = vmatprep.subr.mxu0 0.0
  %177 = vmatpush1.msra.mxu0 0.0
  %178 = vmatprep.subr.mxu0 0.0
  %179 = vmatpush1.msra.mxu0 0.0
  %180 = vmatprep.subr.mxu0 0.0
  %181 = vmatpush1.msra.mxu0 0.0
  %182 = vmatprep.subr.mxu0 0.0
  %183 = vmatpush1.msra.mxu0 0.0
  %184 = vmatprep.subr.mxu0 0.0
  %185 = vmatpush1.msra.mxu0 0.0
  %186 = vmatprep.subr.mxu0 0.0
  %187 = vmatpush1.msra.mxu0 0.0
  %188 = vmatprep.subr.mxu0 0.0
  %189 = vmatpush1.msra.mxu0 0.0
  %190 = vmatprep.subr.mxu0 0.0
  %191 = vmatpush1.msra.mxu0 0.0
  %192 = vmatprep.subr.mxu0 0.0
  %193 = vmatpush1.msra.mxu0 0.0
  %194 = vmatprep.subr.mxu0 0.0
  %195 = vmatpush1.msra.mxu0 0.0
  %196 = vmatprep.subr.mxu0 0.0
  %197 = vmatpush1.msra.mxu0 0.0
  %198 = vmatprep.subr.mxu0 0.0
  %199 = vmatpush1.msra.mxu0 0.0
  %200 = vmatprep.subr.mxu0 0.0
  %201 = vmatpush1.msra.mxu0 0.0
  %202 = vmatprep.mubr.f32.mxu0 0.0
  %203 = vmatmul.mubr.f32.gmra.mrb[0].mxu0 %v29
  %v204 = vpop.f32.mrb[0].mxu0
  %v205 = vadd.f32 0.0, %v204
  %v206 = vpop.f32.mrb[0].mxu0
  %207 = vmatprep.mubr.f32.mxu0 0.0
  %208 = vmatmul.mubr.f32.gmra.mrb[0].mxu0 %v30
  %v209 = vpop.f32.mrb[0].mxu0
  %v210 = vadd.f32 0.0, %v209
  %v211 = vpop.f32.mrb[0].mxu0
  %212 = vdwg.mxu0
  %v213 = vld [vmem:[%s2] sm:$0xff]
  %v214 = vld [vmem:[%s2 + $0x8] sm:$0xff]
  %v215 = vld [vmem:[%s3] sm:$0xff]
  %v216 = vld [vmem:[%s3 + $0x8] sm:$0xff]
  %vm217 = vcmask 130048
  %v219 = vsel %vm217, %v213, 0
  %v222 = vsel %vm217, %v214, 0
  %224 = vmatprep.subr.mxu0 0.0
  %225 = vmatpush1.msra.mxu0 %v114
  %226 = vmatprep.subr.mxu0 0.0
  %227 = vmatpush1.msra.mxu0 %v119
  %228 = vmatprep.subr.mxu0 0.0
  %229 = vmatpush1.msra.mxu0 0.0
  %230 = vmatprep.subr.mxu0 0.0
  %231 = vmatpush1.msra.mxu0 0.0
  %232 = vmatprep.subr.mxu0 0.0
  %233 = vmatpush1.msra.mxu0 0.0
  %234 = vmatprep.subr.mxu0 0.0
  %235 = vmatpush1.msra.mxu0 0.0
  %236 = vmatprep.subr.mxu0 0.0
  %237 = vmatpush1.msra.mxu0 0.0
  %238 = vmatprep.subr.mxu0 0.0
  %239 = vmatpush1.msra.mxu0 0.0
  %240 = vmatprep.subr.mxu0 0.0
  %241 = vmatpush1.msra.mxu0 0.0
  %242 = vmatprep.subr.mxu0 0.0
  %243 = vmatpush1.msra.mxu0 0.0
  %244 = vmatprep.subr.mxu0 0.0
  %245 = vmatpush1.msra.mxu0 0.0
  %246 = vmatprep.subr.mxu0 0.0
  %247 = vmatpush1.msra.mxu0 0.0
  %248 = vmatprep.subr.mxu0 0.0
  %249 = vmatpush1.msra.mxu0 0.0
  %250 = vmatprep.subr.mxu0 0.0
  %251 = vmatpush1.msra.mxu0 0.0
  %252 = vmatprep.subr.mxu0 0.0
  %253 = vmatpush1.msra.mxu0 0.0
  %254 = vmatprep.subr.mxu0 0.0
  %255 = vmatpush1.msra.mxu0 0.0
  %256 = vmatprep.subr.mxu0 0.0
  %257 = vmatpush1.msra.mxu0 0.0
  %258 = vmatprep.subr.mxu0 0.0
  %259 = vmatpush1.msra.mxu0 0.0
  %260 = vmatprep.subr.mxu0 0.0
  %261 = vmatpush1.msra.mxu0 0.0
  %262 = vmatprep.subr.mxu0 0.0
  %263 = vmatpush1.msra.mxu0 0.0
  %264 = vmatprep.subr.mxu0 0.0
  %265 = vmatpush1.msra.mxu0 0.0
  %266 = vmatprep.subr.mxu0 0.0
  %267 = vmatpush1.msra.mxu0 0.0
  %268 = vmatprep.subr.mxu0 0.0
  %269 = vmatpush1.msra.mxu0 0.0
  %270 = vmatprep.subr.mxu0 0.0
  %271 = vmatpush1.msra.mxu0 0.0
  %272 = vmatprep.subr.mxu0 0.0
  %273 = vmatpush1.msra.mxu0 0.0
  %274 = vmatprep.subr.mxu0 0.0
  %275 = vmatpush1.msra.mxu0 0.0
  %276 = vmatprep.subr.mxu0 0.0
  %277 = vmatpush1.msra.mxu0 0.0
  %278 = vmatprep.subr.mxu0 0.0
  %279 = vmatpush1.msra.mxu0 0.0
  %280 = vmatprep.subr.mxu0 0.0
  %281 = vmatpush1.msra.mxu0 0.0
  %282 = vmatprep.subr.mxu0 0.0
  %283 = vmatpush1.msra.mxu0 0.0
  %284 = vmatprep.subr.mxu0 0.0
  %285 = vmatpush1.msra.mxu0 0.0
  %286 = vmatprep.subr.mxu0 0.0
  %287 = vmatpush1.msra.mxu0 0.0
  %288 = vmatprep.mubr.f32.mxu0 0.0
  %289 = vmatmul.mubr.f32.gmra.mrb[0].mxu0 %v219
  %v290 = vpop.f32.mrb[0].mxu0
  %v291 = vadd.f32 0.0, %v290
  %v292 = vpop.f32.mrb[0].mxu0
  %293 = vmatprep.mubr.f32.mxu0 0.0
  %294 = vmatmul.mubr.f32.gmra.mrb[0].mxu0 %v222
  %v295 = vpop.f32.mrb[0].mxu0
  %v296 = vadd.f32 0.0, %v295
  %v297 = vpop.f32.mrb[0].mxu0
  %298 = vdwg.mxu0
  %v300 = vsel %vm217, %v215, 0
  %v303 = vsel %vm217, %v216, 0
  %305 = vmatprep.subr.mxu0 0.0
  %306 = vmatpush1.msra.mxu0 %v205
  %307 = vmatprep.subr.mxu0 0.0
  %308 = vmatpush1.msra.mxu0 %v210
  %309 = vmatprep.subr.mxu0 0.0
  %310 = vmatpush1.msra.mxu0 0.0
  %311 = vmatprep.subr.mxu0 0.0
  %312 = vmatpush1.msra.mxu0 0.0
  %313 = vmatprep.subr.mxu0 0.0
  %314 = vmatpush1.msra.mxu0 0.0
  %315 = vmatprep.subr.mxu0 0.0
  %316 = vmatpush1.msra.mxu0 0.0
  %317 = vmatprep.subr.mxu0 0.0
  %318 = vmatpush1.msra.mxu0 0.0
  %319 = vmatprep.subr.mxu0 0.0
  %320 = vmatpush1.msra.mxu0 0.0
  %321 = vmatprep.subr.mxu0 0.0
  %322 = vmatpush1.msra.mxu0 0.0
  %323 = vmatprep.subr.mxu0 0.0
  %324 = vmatpush1.msra.mxu0 0.0
  %325 = vmatprep.subr.mxu0 0.0
  %326 = vmatpush1.msra.mxu0 0.0
  %327 = vmatprep.subr.mxu0 0.0
  %328 = vmatpush1.msra.mxu0 0.0
  %329 = vmatprep.subr.mxu0 0.0
  %330 = vmatpush1.msra.mxu0 0.0
  %331 = vmatprep.subr.mxu0 0.0
  %332 = vmatpush1.msra.mxu0 0.0
  %333 = vmatprep.subr.mxu0 0.0
  %334 = vmatpush1.msra.mxu0 0.0
  %335 = vmatprep.subr.mxu0 0.0
  %336 = vmatpush1.msra.mxu0 0.0
  %337 = vmatprep.subr.mxu0 0.0
  %338 = vmatpush1.msra.mxu0 0.0
  %339 = vmatprep.subr.mxu0 0.0
  %340 = vmatpush1.msra.mxu0 0.0
  %341 = vmatprep.subr.mxu0 0.0
  %342 = vmatpush1.msra.mxu0 0.0
  %343 = vmatprep.subr.mxu0 0.0
  %344 = vmatpush1.msra.mxu0 0.0
  %345 = vmatprep.subr.mxu0 0.0
  %346 = vmatpush1.msra.mxu0 0.0
  %347 = vmatprep.subr.mxu0 0.0
  %348 = vmatpush1.msra.mxu0 0.0
  %349 = vmatprep.subr.mxu0 0.0
  %350 = vmatpush1.msra.mxu0 0.0
  %351 = vmatprep.subr.mxu0 0.0
  %352 = vmatpush1.msra.mxu0 0.0
  %353 = vmatprep.subr.mxu0 0.0
  %354 = vmatpush1.msra.mxu0 0.0
  %355 = vmatprep.subr.mxu0 0.0
  %356 = vmatpush1.msra.mxu0 0.0
  %357 = vmatprep.subr.mxu0 0.0
  %358 = vmatpush1.msra.mxu0 0.0
  %359 = vmatprep.subr.mxu0 0.0
  %360 = vmatpush1.msra.mxu0 0.0
  %361 = vmatprep.subr.mxu0 0.0
  %362 = vmatpush1.msra.mxu0 0.0
  %363 = vmatprep.subr.mxu0 0.0
  %364 = vmatpush1.msra.mxu0 0.0
  %365 = vmatprep.subr.mxu0 0.0
  %366 = vmatpush1.msra.mxu0 0.0
  %367 = vmatprep.subr.mxu0 0.0
  %368 = vmatpush1.msra.mxu0 0.0
  %369 = vmatprep.mubr.f32.mxu0 0.0
  %370 = vmatmul.mubr.f32.gmra.mrb[0].mxu0 %v300
  %v371 = vpop.f32.mrb[0].mxu0
  %v372 = vadd.f32 0.0, %v371
  %v373 = vpop.f32.mrb[0].mxu0
  %374 = vmatprep.mubr.f32.mxu0 0.0
  %375 = vmatmul.mubr.f32.gmra.mrb[0].mxu0 %v303
  %v376 = vpop.f32.mrb[0].mxu0
  %v377 = vadd.f32 0.0, %v376
  %v378 = vpop.f32.mrb[0].mxu0
  %379 = vdwg.mxu0
  %v380 = vsub.f32 %v291, %v372
  %v381 = vsub.f32 %v296, %v377
  %382 = vmatprep.subr.mxu0 0.0
  %383 = vmatpush1.msra.mxu0 %v114
  %384 = vmatprep.subr.mxu0 0.0
  %385 = vmatpush1.msra.mxu0 %v119
  %386 = vmatprep.subr.mxu0 0.0
  %387 = vmatpush1.msra.mxu0 0.0
  %388 = vmatprep.subr.mxu0 0.0
  %389 = vmatpush1.msra.mxu0 0.0
  %390 = vmatprep.subr.mxu0 0.0
  %391 = vmatpush1.msra.mxu0 0.0
  %392 = vmatprep.subr.mxu0 0.0
  %393 = vmatpush1.msra.mxu0 0.0
  %394 = vmatprep.subr.mxu0 0.0
  %395 = vmatpush1.msra.mxu0 0.0
  %396 = vmatprep.subr.mxu0 0.0
  %397 = vmatpush1.msra.mxu0 0.0
  %398 = vmatprep.subr.mxu0 0.0
  %399 = vmatpush1.msra.mxu0 0.0
  %400 = vmatprep.subr.mxu0 0.0
  %401 = vmatpush1.msra.mxu0 0.0
  %402 = vmatprep.subr.mxu0 0.0
  %403 = vmatpush1.msra.mxu0 0.0
  %404 = vmatprep.subr.mxu0 0.0
  %405 = vmatpush1.msra.mxu0 0.0
  %406 = vmatprep.subr.mxu0 0.0
  %407 = vmatpush1.msra.mxu0 0.0
  %408 = vmatprep.subr.mxu0 0.0
  %409 = vmatpush1.msra.mxu0 0.0
  %410 = vmatprep.subr.mxu0 0.0
  %411 = vmatpush1.msra.mxu0 0.0
  %412 = vmatprep.subr.mxu0 0.0
  %413 = vmatpush1.msra.mxu0 0.0
  %414 = vmatprep.subr.mxu0 0.0
  %415 = vmatpush1.msra.mxu0 0.0
  %416 = vmatprep.subr.mxu0 0.0
  %417 = vmatpush1.msra.mxu0 0.0
  %418 = vmatprep.subr.mxu0 0.0
  %419 = vmatpush1.msra.mxu0 0.0
  %420 = vmatprep.subr.mxu0 0.0
  %421 = vmatpush1.msra.mxu0 0.0
  %422 = vmatprep.subr.mxu0 0.0
  %423 = vmatpush1.msra.mxu0 0.0
  %424 = vmatprep.subr.mxu0 0.0
  %425 = vmatpush1.msra.mxu0 0.0
  %426 = vmatprep.subr.mxu0 0.0
  %427 = vmatpush1.msra.mxu0 0.0
  %428 = vmatprep.subr.mxu0 0.0
  %429 = vmatpush1.msra.mxu0 0.0
  %430 = vmatprep.subr.mxu0 0.0
  %431 = vmatpush1.msra.mxu0 0.0
  %432 = vmatprep.subr.mxu0 0.0
  %433 = vmatpush1.msra.mxu0 0.0
  %434 = vmatprep.subr.mxu0 0.0
  %435 = vmatpush1.msra.mxu0 0.0
  %436 = vmatprep.subr.mxu0 0.0
  %437 = vmatpush1.msra.mxu0 0.0
  %438 = vmatprep.subr.mxu0 0.0
  %439 = vmatpush1.msra.mxu0 0.0
  %440 = vmatprep.subr.mxu0 0.0
  %441 = vmatpush1.msra.mxu0 0.0
  %442 = vmatprep.subr.mxu0 0.0
  %443 = vmatpush1.msra.mxu0 0.0
  %444 = vmatprep.subr.mxu0 0.0
  %445 = vmatpush1.msra.mxu0 0.0
  %446 = vmatprep.mubr.f32.mxu0 0.0
  %447 = vmatmul.mubr.f32.gmra.mrb[0].mxu0 %v300
  %v448 = vpop.f32.mrb[0].mxu0
  %v449 = vadd.f32 0.0, %v448
  %v450 = vpop.f32.mrb[0].mxu0
  %451 = vmatprep.mubr.f32.mxu0 0.0
  %452 = vmatmul.mubr.f32.gmra.mrb[0].mxu0 %v303
  %v453 = vpop.f32.mrb[0].mxu0
  %v454 = vadd.f32 0.0, %v453
  %v455 = vpop.f32.mrb[0].mxu0
  %456 = vdwg.mxu0
  %457 = vmatprep.subr.mxu0 0.0
  %458 = vmatpush1.msra.mxu0 %v205
  %459 = vmatprep.subr.mxu0 0.0
  %460 = vmatpush1.msra.mxu0 %v210
  %461 = vmatprep.subr.mxu0 0.0
  %462 = vmatpush1.msra.mxu0 0.0
  %463 = vmatprep.subr.mxu0 0.0
  %464 = vmatpush1.msra.mxu0 0.0
  %465 = vmatprep.subr.mxu0 0.0
  %466 = vmatpush1.msra.mxu0 0.0
  %467 = vmatprep.subr.mxu0 0.0
  %468 = vmatpush1.msra.mxu0 0.0
  %469 = vmatprep.subr.mxu0 0.0
  %470 = vmatpush1.msra.mxu0 0.0
  %471 = vmatprep.subr.mxu0 0.0
  %472 = vmatpush1.msra.mxu0 0.0
  %473 = vmatprep.subr.mxu0 0.0
  %474 = vmatpush1.msra.mxu0 0.0
  %475 = vmatprep.subr.mxu0 0.0
  %476 = vmatpush1.msra.mxu0 0.0
  %477 = vmatprep.subr.mxu0 0.0
  %478 = vmatpush1.msra.mxu0 0.0
  %479 = vmatprep.subr.mxu0 0.0
  %480 = vmatpush1.msra.mxu0 0.0
  %481 = vmatprep.subr.mxu0 0.0
  %482 = vmatpush1.msra.mxu0 0.0
  %483 = vmatprep.subr.mxu0 0.0
  %484 = vmatpush1.msra.mxu0 0.0
  %485 = vmatprep.subr.mxu0 0.0
  %486 = vmatpush1.msra.mxu0 0.0
  %487 = vmatprep.subr.mxu0 0.0
  %488 = vmatpush1.msra.mxu0 0.0
  %489 = vmatprep.subr.mxu0 0.0
  %490 = vmatpush1.msra.mxu0 0.0
  %491 = vmatprep.subr.mxu0 0.0
  %492 = vmatpush1.msra.mxu0 0.0
  %493 = vmatprep.subr.mxu0 0.0
  %494 = vmatpush1.msra.mxu0 0.0
  %495 = vmatprep.subr.mxu0 0.0
  %496 = vmatpush1.msra.mxu0 0.0
  %497 = vmatprep.subr.mxu0 0.0
  %498 = vmatpush1.msra.mxu0 0.0
  %499 = vmatprep.subr.mxu0 0.0
  %500 = vmatpush1.msra.mxu0 0.0
  %501 = vmatprep.subr.mxu0 0.0
  %502 = vmatpush1.msra.mxu0 0.0
  %503 = vmatprep.subr.mxu0 0.0
  %504 = vmatpush1.msra.mxu0 0.0
  %505 = vmatprep.subr.mxu0 0.0
  %506 = vmatpush1.msra.mxu0 0.0
  %507 = vmatprep.subr.mxu0 0.0
  %508 = vmatpush1.msra.mxu0 0.0
  %509 = vmatprep.subr.mxu0 0.0
  %510 = vmatpush1.msra.mxu0 0.0
  %511 = vmatprep.subr.mxu0 0.0
  %512 = vmatpush1.msra.mxu0 0.0
  %513 = vmatprep.subr.mxu0 0.0
  %514 = vmatpush1.msra.mxu0 0.0
  %515 = vmatprep.subr.mxu0 0.0
  %516 = vmatpush1.msra.mxu0 0.0
  %517 = vmatprep.subr.mxu0 0.0
  %518 = vmatpush1.msra.mxu0 0.0
  %519 = vmatprep.subr.mxu0 0.0
  %520 = vmatpush1.msra.mxu0 0.0
  %521 = vmatprep.mubr.f32.mxu0 0.0
  %522 = vmatmul.mubr.f32.gmra.mrb[0].mxu0 %v219
  %v523 = vpop.f32.mrb[0].mxu0
  %v524 = vadd.f32 %v449, %v523
  %v525 = vpop.f32.mrb[0].mxu0
  %526 = vmatprep.mubr.f32.mxu0 0.0
  %527 = vmatmul.mubr.f32.gmra.mrb[0].mxu0 %v222
  %v528 = vpop.f32.mrb[0].mxu0
  %v529 = vadd.f32 %v454, %v528
  %v530 = vpop.f32.mrb[0].mxu0
  %531 = vdwg.mxu0
  %v532 = vmul.f32 %v380, %v380
  %v533 = vmul.f32 %v381, %v381
  %v534 = vmul.f32 %v524, %v524
  %v535 = vmul.f32 %v529, %v529
  %v536 = vadd.f32 %v532, %v534
  %v537 = vadd.f32 %v533, %v535
  %v538 = vrsqrt.pop %v536
  %v539 = vmul.f32 %v536, %v538
  %vm540 = vcmp.eq.f32.partialorder %v536, inf
  %v541 = vsel %vm540, %v536, %v539
  %vm542 = vcmp.eq.f32.partialorder %v536, 0.0
  %v543 = vand.u32 %v536, 2147483648
  %v544 = vsel %vm542, %v543, %v541
  %v545 = vrsqrt.pop %v537
  %v546 = vmul.f32 %v537, %v545
  %vm547 = vcmp.eq.f32.partialorder %v537, inf
  %v548 = vsel %vm547, %v537, %v546
  %vm549 = vcmp.eq.f32.partialorder %v537, 0.0
  %v550 = vand.u32 %v537, 2147483648
  %v551 = vsel %vm549, %v550, %v548
  %v552 = vmul.f32 %v544, %v536
  %v553 = vmul.f32 %v551, %v537
  %v554 = vmax.f32 %v536, %v537
  %v555 = vrot.slane %v554, 4
  %v556 = vmax.f32 %v554, %v555
  %v557 = vrot.slane %v556, 2
  %v558 = vmax.f32 %v556, %v557
  %v559 = vrot.slane %v558, 1
  %v560 = vmax.f32 %v558, %v559
  %561 = vst [vmem:[%s6] sm:$0x1] %v560
  %v562 = vadd.f32 %v552, %v553
  %v563 = vrot.slane %v562, 4
  %v564 = vadd.f32 %v562, %v563
  %v565 = vrot.slane %v564, 2
  %v566 = vadd.f32 %v564, %v565
  %v567 = vrot.slane %v566, 1
  %v568 = vadd.f32 %v566, %v567
  %569 = vst [vmem:[%s7] sm:$0x1] %v568
  // Predicated region
  $region26: #{focal_frequency_loss.1} parent=0 // pred_check
    _
  $region27: #{focal_frequency_loss.1} parent=0 // pred_check_branch
    %571 = sbr.rel (0) target = $region29
  $region28: #{focal_frequency_loss.1} parent=0 // pred_region
    _
  $region29: #{focal_frequency_loss.1} parent=0 // pred_fallthru
    _
  // Predicated region
  $region30: #{focal_frequency_loss.1} parent=0 // pred_check
    _
  $region31: #{focal_frequency_loss.1} parent=0 // pred_check_branch
    %573 = sbr.rel (0) target = $region33
  $region32: #{focal_frequency_loss.1} parent=0 // pred_region
    _
  $region33: #{focal_frequency_loss.1} parent=0 // pred_fallthru
    _
  // Predicated region
  $region34: #{focal_frequency_loss.1} parent=0 // pred_check
    _
  $region35: #{focal_frequency_loss.1} parent=0 // pred_check_branch
    %575 = sbr.rel (0) target = $region37
  $region36: #{focal_frequency_loss.1} parent=0 // pred_region
    _
  $region37: #{focal_frequency_loss.1} parent=0 // pred_fallthru
    _
  // Predicated region
  $region38: #{focal_frequency_loss.1} parent=0 // pred_check
    _
  $region39: #{focal_frequency_loss.1} parent=0 // pred_check_branch
    %577 = sbr.rel (0) target = $region41
  $region40: #{focal_frequency_loss.1} parent=0 // pred_region
    _
  $region41: #{focal_frequency_loss.1} parent=0 // pred_fallthru
    _

</llo_original>
